<compile_context>
chip_gen: v6e
topology: v6e:2x2x1
jax: 0.10.0
libtpu: 0.0.40
codegen_flags: <defaults>
</compile_context>

<pallas_src>
import functools

import jax
import jax.numpy as jnp
from jax.experimental import pallas as pl
from jax.experimental.pallas import tpu as pltpu


def _round_up(x, m):
    return (x + m - 1) // m * m


_MIB = 1 << 20


def _vmem_limit(nbytes):
    # Size the scoped-VMEM limit from the actual block footprint (+ headroom)
    # instead of relying on the 16/32 MiB defaults.  Capped at 100 MiB
    # (v5e/v6e have 128 MiB physical VMEM; on v7x the physical ceiling is
    # 64 MiB -- at these block sizes we stay well under it).
    return int(min(max(nbytes + 8 * _MIB, 32 * _MIB), 100 * _MIB))


# ---------------------------------------------------------------------------
# Kernel 1: row- and K-tiled dense projection  out = x @ w + b
# Used for the hoisted input projection over all timesteps at once.  Rows are
# tiled ("parallel"), K is a reduction grid axis ("arbitrary") with a VMEM f32
# accumulator so large K never blows VMEM and weight DMA pipelines against
# compute.  x is cast to the weight dtype (bf16) for the MXU dot.
# ---------------------------------------------------------------------------
def _proj_kernel(x_ref, w_ref, b_ref, o_ref, acc_ref):
    @pl.when(pl.program_id(1) == 0)
    def _():
        acc_ref[...] = jnp.zeros_like(acc_ref)

    acc_ref[...] += jnp.dot(x_ref[...].astype(w_ref.dtype), w_ref[...],
                            preferred_element_type=jnp.float32)

    @pl.when(pl.program_id(1) == pl.num_programs(1) - 1)
    def _():
        o_ref[...] = (acc_ref[...] + b_ref[...]).astype(o_ref.dtype)


def _dense_proj(x, w, b, *, out_dtype=jnp.float32, tm=512, tk=512):
    """x: (rows, K), w: (K, N), b: (1, N) -> (rows, N).

    N must be a multiple of 128 (callers pad).  Rows are padded to the row
    tile and K to the K tile; zero padding contributes nothing to the result.
    """
    rows, k = x.shape
    n = w.shape[1]

    tm = min(tm, _round_up(rows, 8))          # tm=512: mem-bound roofline sweet spot
    rows_pad = _round_up(rows, tm)

    if k <= tk:
        tk = k                                # whole (small) K in one block
        k_pad = k
    else:
        k_pad = _round_up(k, tk)

    if rows_pad != rows or k_pad != k:
        x = jnp.pad(x, ((0, rows_pad - rows), (0, k_pad - k)))
    if k_pad != k:
        w = jnp.pad(w, ((0, k_pad - k), (0, 0)))
    k_steps = k_pad // tk

    # Constant-index blocks only need a single buffer (no re-DMA).
    if k_steps == 1:
        w_spec = pl.BlockSpec((tk, n), lambda i, kk: (kk, 0),
                              pipeline_mode=pl.Buffered(1))
    else:
        w_spec = pl.BlockSpec((tk, n), lambda i, kk: (kk, 0))
    b_spec = pl.BlockSpec((1, n), lambda i, kk: (0, 0),
                          pipeline_mode=pl.Buffered(1))

    out_itemsize = jnp.dtype(out_dtype).itemsize
    vmem_bytes = (2 * tm * tk * x.dtype.itemsize            # x (double-buffered)
                  + (1 if k_steps == 1 else 2) * tk * n * w.dtype.itemsize
                  + n * b.dtype.itemsize                     # bias (single)
                  + 2 * tm * n * out_itemsize                # out (double-buffered)
                  + tm * n * 4)                              # f32 accumulator

    out = pl.pallas_call(
        _proj_kernel,
        out_shape=jax.ShapeDtypeStruct((rows_pad, n), out_dtype),
        grid_spec=pltpu.PrefetchScalarGridSpec(
            num_scalar_prefetch=0,
            grid=(rows_pad // tm, k_steps),
            in_specs=[
                pl.BlockSpec((tm, tk), lambda i, kk: (i, kk)),
                w_spec,
                b_spec,
            ],
            out_specs=pl.BlockSpec((tm, n), lambda i, kk: (i, 0)),
            scratch_shapes=[pltpu.VMEM((tm, n), jnp.float32)],
        ),
        compiler_params=pltpu.CompilerParams(
            dimension_semantics=("parallel", "arbitrary"),
            vmem_limit_bytes=_vmem_limit(vmem_bytes)),
    )(x, w, b)
    return out[:rows]


# ---------------------------------------------------------------------------
# Kernel 2: the LSTM recurrence with the output head fused in.
# Only the W_hh matmul is truly recurrent; the input projection + biases live
# in pre_ref.  t_chunk timesteps are processed per grid step; the chunk's
# hidden states are kept in a VMEM scratch and projected through W_out in one
# lane-dense MXU matmul at the end of the chunk (no h_all HBM round-trip).
# ---------------------------------------------------------------------------
def _lstm_rec_kernel(pre_ref, whh_ref, wout_ref, bout_ref, out_ref,
                     h_scr, c_scr, h_hist, *, h_pad, t_chunk, unroll):
    @pl.when(pl.program_id(0) == 0)
    def _():
        h_scr[...] = jnp.zeros_like(h_scr)
        c_scr[...] = jnp.zeros_like(c_scr)

    mxu_dtype = whh_ref.dtype

    def step(t, carry):
        h_prev = h_scr[...]                      # (B_pad, H_pad) f32
        c_prev = c_scr[...]
        # One fused recurrent dot per timestep; bias/input proj pre-folded.
        # Weights (and the h fed to the MXU) are bf16; accumulation and all
        # gate math stay f32.
        gates = pre_ref[t] + jnp.dot(h_prev.astype(mxu_dtype), whh_ref[...],
                                     preferred_element_type=jnp.float32)
        # Gate slices are lane-aligned: h_pad is a multiple of 128, so each
        # slice is whole vregs (no cross-lane extraction / masking).
        i_g = jax.nn.sigmoid(gates[:, 0 * h_pad:1 * h_pad])
        f_g = jax.nn.sigmoid(gates[:, 1 * h_pad:2 * h_pad])
        g_g = jnp.tanh(gates[:, 2 * h_pad:3 * h_pad])
        o_g = jax.nn.sigmoid(gates[:, 3 * h_pad:4 * h_pad])
        c_new = f_g * c_prev + i_g * g_g
        h_new = o_g * jnp.tanh(c_new)
        c_scr[...] = c_new
        h_scr[...] = h_new
        h_hist[t] = h_new
        return carry

    # Bounded unroll (see wrapper) so large H does not spill the 64 vregs.
    jax.lax.fori_loop(0, t_chunk, step, 0, unroll=unroll)

    # Fused output head: one lane-dense MXU matmul over all t_chunk * B_pad
    # hidden rows of this chunk (outside the serial per-step chain).
    b_pad = h_hist.shape[1]
    h_flat = h_hist[...].reshape(t_chunk * b_pad, h_pad).astype(mxu_dtype)
    out = jnp.dot(h_flat, wout_ref[...],
                  preferred_element_type=jnp.float32) + bout_ref[...]
    out_ref[...] = out.reshape(out_ref.shape).astype(out_ref.dtype)


def rnn_forward(x, params, *, t_chunk=16, matmul_dtype=jnp.bfloat16):
    """x: (T, B, I) float32.  params: dict with PyTorch-convention weights."""
    T, B, I = x.shape
    H = params["weight_hh"].shape[1]
    O = params["w_out"].shape[0]

    f32 = jnp.float32
    B_pad = _round_up(B, 8)          # sublane alignment for the recurrence
    H_pad = _round_up(H, 128)        # lane alignment -> unmasked gate slices
    O_pad = _round_up(O, 128)        # lane-dense output stores
    G = 4 * H_pad
    t_chunk = min(t_chunk, T)
    T_pad = _round_up(T, t_chunk)

    # --- Lay out weights lane-aligned: each of the 4 gates gets its own
    # H_pad-wide group.  Zero weight padding keeps the real outputs exact
    # regardless of what the padded hidden lanes / batch rows contain. ---
    wih = params["weight_ih"].astype(f32)                       # (4H, I)
    whh = params["weight_hh"].astype(f32)                       # (4H, H)
    bias = (params["bias_ih"] + params["bias_hh"]).astype(f32)  # (4H,)

    def pad_gate_rows(w):                                       # (4H,K)->(G,K)
        w4 = w.reshape(4, H, -1)
        w4 = jnp.pad(w4, ((0, 0), (0, H_pad - H), (0, 0)))
        return w4.reshape(4 * H_pad, -1)

    # bf16 weights: half the VMEM/HBM bytes, MXU-native on v5e/v6e/v7x.
    # f32 accumulation is kept via preferred_element_type inside the kernels.
    wih_t = pad_gate_rows(wih).T.astype(matmul_dtype)           # (I, G)
    whh_t = jnp.pad(pad_gate_rows(whh),
                    ((0, 0), (0, H_pad - H))).T.astype(matmul_dtype)   # (H_pad, G)
    bias4 = jnp.pad(bias.reshape(4, H),
                    ((0, 0), (0, H_pad - H))).reshape(1, G)     # f32

    wout = params["w_out"].astype(f32)                          # (O, H)
    bout = params["b_out"].astype(f32)                          # (O,)
    wout_t = jnp.pad(wout, ((0, O_pad - O),
                            (0, H_pad - H))).T.astype(matmul_dtype)    # (H_pad, O_pad)
    bout_p = jnp.pad(bout, (0, O_pad - O)).reshape(1, O_pad)    # f32

    # --- Hoisted input projection over the REAL T*B rows only (no batch
    # padding baked into the big matmul), bias folded in. ---
    pre = _dense_proj(x.astype(f32).reshape(T * B, I), wih_t, bias4)
    pre = pre.reshape(T, B, G)
    # Lay out for the recurrence: pad batch to the sublane boundary and time
    # to whole chunks.  Padded rows / trailing timesteps never feed real rows
    # and are sliced off at the end, so their contents are irrelevant.
    pre = jnp.pad(pre, ((0, T_pad - T), (0, B_pad - B), (0, 0)))

    # Bounded unroll: at large H the fully-unrolled chunk holds many
    # (B_pad, 4*H_pad) gate tensors live and spills vregs.
    unroll = True if H_pad <= 256 else 4

    # TODO(synk): on v7x, split B_pad across the two TensorCores (leading
    #             "parallel" batch-tile grid axis with per-core h/c scratch)
    #             once the effective batch exceeds one sublane tile.
    # TODO(synk): on v5e/v6e, hold W_hh^T in the MXU weight-staging registers
    #             across the chunk via pltpu.matmul_push_rhs/acc_lhs/pop.
    kernel = functools.partial(_lstm_rec_kernel, h_pad=H_pad,
                               t_chunk=t_chunk, unroll=unroll)

    wsize = jnp.dtype(matmul_dtype).itemsize
    rec_vmem = (2 * t_chunk * B_pad * G * 4             # pre (double-buffered)
                + H_pad * G * wsize                     # W_hh^T (single buffer)
                + H_pad * O_pad * wsize                 # W_out^T (single buffer)
                + O_pad * 4                             # b_out (single buffer)
                + 2 * t_chunk * B_pad * O_pad * 4       # out (double-buffered)
                + (2 + t_chunk) * B_pad * H_pad * 4)    # h, c, h_hist scratch

    out = pl.pallas_call(
        kernel,
        out_shape=jax.ShapeDtypeStruct((T_pad, B_pad, O_pad), f32),
        grid_spec=pltpu.PrefetchScalarGridSpec(
            num_scalar_prefetch=0,
            grid=(T_pad // t_chunk,),
            in_specs=[
                pl.BlockSpec((t_chunk, B_pad, G), lambda c: (c, 0, 0)),  # pre
                pl.BlockSpec((H_pad, G), lambda c: (0, 0),               # W_hh^T
                             pipeline_mode=pl.Buffered(1)),
                pl.BlockSpec((H_pad, O_pad), lambda c: (0, 0),           # W_out^T
                             pipeline_mode=pl.Buffered(1)),
                pl.BlockSpec((1, O_pad), lambda c: (0, 0),               # b_out
                             pipeline_mode=pl.Buffered(1)),
            ],
            out_specs=pl.BlockSpec((t_chunk, B_pad, O_pad),
                                   lambda c: (c, 0, 0)),
            scratch_shapes=[
                pltpu.VMEM((B_pad, H_pad), f32),             # h state (persists)
                pltpu.VMEM((B_pad, H_pad), f32),             # c state (persists)
                pltpu.VMEM((t_chunk, B_pad, H_pad), f32),    # h history per chunk
            ],
        ),
        compiler_params=pltpu.CompilerParams(
            dimension_semantics=("arbitrary",),   # time recurrence is serial
            vmem_limit_bytes=_vmem_limit(rec_vmem)),
    )(pre, whh_t, wout_t, bout_p)

    return out[:T, :B, :O]


def rnn_reference(x, params):
    """Pure-JAX reference matching PyTorch nn.LSTM + Linear semantics."""
    H = params["weight_hh"].shape[1]
    wih, whh = params["weight_ih"], params["weight_hh"]
    b = params["bias_ih"] + params["bias_hh"]

    def step(carry, x_t):
        h, c = carry
        gates = x_t @ wih.T + h @ whh.T + b
        i = jax.nn.sigmoid(gates[:, 0 * H:1 * H])
        f = jax.nn.sigmoid(gates[:, 1 * H:2 * H])
        g = jnp.tanh(gates[:, 2 * H:3 * H])
        o = jax.nn.sigmoid(gates[:, 3 * H:4 * H])
        c = f * c + i * g
        h = o * jnp.tanh(c)
        return (h, c), h

    B = x.shape[1]
    h0 = jnp.zeros((B, H), jnp.float32)
    c0 = jnp.zeros((B, H), jnp.float32)
    _, hs = jax.lax.scan(step, (h0, c0), x)
    return hs @ params["w_out"].T + params["b_out"]


def make_params(key, input_size, hidden_size, output_size):
    ks = jax.random.split(key, 6)
    s = 1.0 / jnp.sqrt(hidden_size)
    return {
        "weight_ih": jax.random.uniform(ks[0], (4 * hidden_size, input_size),
                                        jnp.float32, -s, s),
        "weight_hh": jax.random.uniform(ks[1], (4 * hidden_size, hidden_size),
                                        jnp.float32, -s, s),
        "bias_ih": jax.random.uniform(ks[2], (4 * hidden_size,), jnp.float32, -s, s),
        "bias_hh": jax.random.uniform(ks[3], (4 * hidden_size,), jnp.float32, -s, s),
        "w_out": jax.random.uniform(ks[4], (output_size, hidden_size),
                                    jnp.float32, -s, s),
        "b_out": jax.random.uniform(ks[5], (output_size,), jnp.float32, -s, s),
    }


if __name__ == "__main__":
    seq_len, batch, input_size, hidden_size, output_size = 8, 2, 8, 32, 16

    key = jax.random.PRNGKey(0)
    kx, kp = jax.random.split(key)
    x = jax.random.normal(kx, (seq_len, batch, input_size), jnp.float32)
    params = make_params(kp, input_size, hidden_size, output_size)

    ref = rnn_reference(x, params)

    # Structural / exactness check: f32 matmuls, tight tolerance.
    out_f32 = jax.block_until_ready(
        rnn_forward(x, params, matmul_dtype=jnp.float32))
    assert out_f32.shape == (seq_len, batch, output_size)
    assert jnp.allclose(out_f32, ref, atol=2e-5, rtol=2e-5), \
        float(jnp.max(jnp.abs(out_f32 - ref)))

    # Production path: bf16 weights/activations on the MXU, f32 accumulation
    # and gate math; relaxed tolerance against the f32 reference.
    out = jax.block_until_ready(rnn_forward(x, params))
    assert out.shape == (seq_len, batch, output_size)
    assert jnp.allclose(out, ref, atol=5e-2, rtol=5e-2), \
        float(jnp.max(jnp.abs(out - ref)))

    print("KERNEL_OK")
</pallas_src>

<mosaic_0001>
module attributes {stable_mosaic.version = 11 : i64} {
  func.func @_proj_kernel(%arg0: i32, %arg1: i32, %arg2: memref<16x8xf32, #tpu.memory_space<vmem>>, %arg3: memref<8x512xf32, #tpu.memory_space<vmem>>, %arg4: memref<1x512xf32, #tpu.memory_space<vmem>>, %arg5: memref<16x512xf32, #tpu.memory_space<vmem>>, %arg6: memref<16x512xf32, #tpu.memory_space<vmem>>) attributes {dimension_semantics = [#tpu.dimension_semantics<parallel>, #tpu.dimension_semantics<arbitrary>], iteration_bounds = array<i64: 1, 1>, scalar_prefetch = 0 : i64, scratch_operands = 1 : i64, tpu.core_type = #tpu.core_type<tc>, window_params = [{transform_indices = @transform_0, window_bounds = array<i64: 16, 8>}, {pipeline_mode = #tpu.pipeline_mode<synchronous>, transform_indices = @transform_1, window_bounds = array<i64: 8, 512>}, {pipeline_mode = #tpu.pipeline_mode<synchronous>, transform_indices = @transform_2, window_bounds = array<i64: 1, 512>}, {transform_indices = @transform_3, window_bounds = array<i64: 16, 512>}]} {
    %c0_i32 = arith.constant 0 : i32
    %0 = arith.cmpi eq, %arg1, %c0_i32 : i32
    %1 = arith.extui %0 : i1 to i32
    %c0_i32_0 = arith.constant 0 : i32
    %2 = arith.cmpi ne, %1, %c0_i32_0 : i32
    scf.if %2 {
      %cst_10 = arith.constant 0.000000e+00 : f32
      %12 = vector.broadcast %cst_10 : f32 to vector<16x512xf32>
      %c0_11 = arith.constant 0 : index
      %c0_12 = arith.constant 0 : index
      %13 = vector.load %arg6[%c0_11, %c0_12] : memref<16x512xf32, #tpu.memory_space<vmem>>, vector<16x512xf32>
      tpu.vector_store %arg6[%c0_11, %c0_12], %12 {strides = array<i32>} : memref<16x512xf32, #tpu.memory_space<vmem>>, vector<16x512xf32>,
    } else {
    }
    %c0 = arith.constant 0 : index
    %c0_1 = arith.constant 0 : index
    %3 = vector.load %arg6[%c0, %c0_1] : memref<16x512xf32, #tpu.memory_space<vmem>>, vector<16x512xf32>
    %c0_2 = arith.constant 0 : index
    %c0_3 = arith.constant 0 : index
    %4 = vector.load %arg2[%c0_2, %c0_3] : memref<16x8xf32, #tpu.memory_space<vmem>>, vector<16x8xf32>
    %c0_4 = arith.constant 0 : index
    %c0_5 = arith.constant 0 : index
    %5 = vector.load %arg3[%c0_4, %c0_5] : memref<8x512xf32, #tpu.memory_space<vmem>>, vector<8x512xf32>
    %cst = arith.constant dense<0.000000e+00> : vector<16x512xf32>
    %6 = tpu.matmul %4, %5, %cst {dimension_numbers = #tpu.dot_dimension_numbers<[1], [0], [0], [1], [0, 0, 1, 1], [], []>} : vector<16x8xf32>, vector<8x512xf32>, vector<16x512xf32> -> vector<16x512xf32>
    %7 = arith.addf %3, %6 : vector<16x512xf32>
    %c0_6 = arith.constant 0 : index
    %c0_7 = arith.constant 0 : index
    %8 = vector.load %arg6[%c0_6, %c0_7] : memref<16x512xf32, #tpu.memory_space<vmem>>, vector<16x512xf32>
    tpu.vector_store %arg6[%c0_6, %c0_7], %7 {strides = array<i32>} : memref<16x512xf32, #tpu.memory_space<vmem>>, vector<16x512xf32>,
    %c0_i32_8 = arith.constant 0 : i32
    %9 = arith.cmpi eq, %arg1, %c0_i32_8 : i32
    %10 = arith.extui %9 : i1 to i32
    %c0_i32_9 = arith.constant 0 : i32
    %11 = arith.cmpi ne, %10, %c0_i32_9 : i32
    scf.if %11 {
      %c0_10 = arith.constant 0 : index
      %c0_11 = arith.constant 0 : index
      %12 = vector.load %arg6[%c0_10, %c0_11] : memref<16x512xf32, #tpu.memory_space<vmem>>, vector<16x512xf32>
      %c0_12 = arith.constant 0 : index
      %c0_13 = arith.constant 0 : index
      %13 = vector.load %arg4[%c0_12, %c0_13] : memref<1x512xf32, #tpu.memory_space<vmem>>, vector<1x512xf32>
      %14 = vector.broadcast %13 : vector<1x512xf32> to vector<16x512xf32>
      %15 = arith.addf %12, %14 : vector<16x512xf32>
      %c0_14 = arith.constant 0 : index
      %c0_15 = arith.constant 0 : index
      %16 = vector.load %arg5[%c0_14, %c0_15] : memref<16x512xf32, #tpu.memory_space<vmem>>, vector<16x512xf32>
      tpu.vector_store %arg5[%c0_14, %c0_15], %15 {strides = array<i32>} : memref<16x512xf32, #tpu.memory_space<vmem>>, vector<16x512xf32>,
    } else {
    }
    return
  }
  func.func @transform_0(%arg0: i32, %arg1: i32) -> (i32, i32) {
    %c0_i32 = arith.constant 0 : i32
    return %arg0, %arg1 : i32, i32
  }
  func.func @transform_1(%arg0: i32, %arg1: i32) -> (i32, i32) {
    %c0_i32 = arith.constant 0 : i32
    %c0_i32_0 = arith.constant 0 : i32
    return %arg1, %c0_i32 : i32, i32
  }
  func.func @transform_2(%arg0: i32, %arg1: i32) -> (i32, i32) {
    %c0_i32 = arith.constant 0 : i32
    %c0_i32_0 = arith.constant 0 : i32
    %c0_i32_1 = arith.constant 0 : i32
    return %c0_i32, %c0_i32_0 : i32, i32
  }
  func.func @transform_3(%arg0: i32, %arg1: i32) -> (i32, i32) {
    %c0_i32 = arith.constant 0 : i32
    %c0_i32_0 = arith.constant 0 : i32
    return %arg0, %c0_i32 : i32, i32
  }
}

</mosaic_0001>

<llo_original>
// kernel: tpu_custom_call.1
$region0: #{tpu_custom_call.1}
  #allocation0 [shape = 'u32[]', space=smem, size = 0x4, offset = 0x4, fixed_abs, tag = 'smem constant byte address 0x4 - core index']
  #allocation1 [shape = 'u32[144,128]{1,0:T(1,128)}', space=vmem, size = 0x12000, scoped, tag = 'internal scratch']
  #allocation2 [shape = 'f32[16,512]{1,0:T(8,128)}', space=vmem, size = 0x8000, scoped, tag = 'scratch operand']
  %s0 = inlined_call_operand.vmem [shape: f32[16,8], index: 0, kind: input, shape index: {}]
  %s1 = inlined_call_operand.hbm [shape: f32[8,512], index: 1, kind: input, shape index: {}]
  %s2 = inlined_call_operand.vmem [shape: f32[1,512], index: 2, kind: input, shape index: {}]
  %s3 = inlined_call_operand.hbm [shape: f32[16,512], index: 3, kind: output, shape index: {}]
  %s4 = sld [smem:[#allocation0]]
  $region34: #{tpu_custom_call.1} parent=0
    _
  %s6 = ssub.s32 1, %s4
  %s7 = scalar_select 0, %s6, %s4
  $region1: #{tpu_custom_call.1} parent=0
    #allocation3 [shape = 'u8[16384]{0}', space=vmem, size = 0x4000, scoped, tag = 'input window, operand 1, single buffered']
    #allocation4 [shape = 's32[1]{0}', space=sflag, size = 0x4, scoped, tag = 'scoped memory for tpu_custom_call.1']
    #allocation5 [shape = 's32[1]{0}', space=sflag, size = 0x4, scoped, tag = 'scoped memory for tpu_custom_call.1']
    #allocation6 [shape = 'u8[32768]{0}', space=vmem, size = 0x8000, scoped, tag = 'output window, operand 0, single buffered']
    %8 = vsyncpa [#allocation4], 0
    %9 = vsyncpa [#allocation5], 0
    // Predicated region
    $region2: #{tpu_custom_call.1} parent=1 // pred_check
      _
    $region3: #{tpu_custom_call.1} parent=1 // pred_check_branch
      %11 = sbr.rel (0) target = $region5
    $region4: #{tpu_custom_call.1} parent=1 // pred_region
      _
    $region5: #{tpu_custom_call.1} parent=1 // pred_fallthru
      _
    // Predicated region
    $region6: #{tpu_custom_call.1} parent=1 // pred_check
      _
    $region7: #{tpu_custom_call.1} parent=1 // pred_check_branch
      %13 = sbr.rel (0) target = $region9
    $region8: #{tpu_custom_call.1} parent=1 // pred_region
      %s15 = ssub.s32 512, 512
      %16 = vsyncadd [#allocation4], %s15
      %s18 = sshll.u32 [#allocation3], 4
      %s19 = int_to_ptr.vmem [resolvable:$true] %s18
      %21 = dma.hbm_to_vmem [thread:$0]  %s1, 512, %s19, [#allocation4]
    $region9: #{tpu_custom_call.1} parent=1 // pred_fallthru
      _
    // Predicated region
    $region10: #{tpu_custom_call.1} parent=1 // pred_check
      _
    $region11: #{tpu_custom_call.1} parent=1 // pred_check_branch
      %23 = sbr.rel (0) target = $region13
    $region12: #{tpu_custom_call.1} parent=1 // pred_region
      _
    $region13: #{tpu_custom_call.1} parent=1 // pred_fallthru
      _
    // Predicated region
    $region14: #{tpu_custom_call.1} parent=1 // pred_check
      _
    $region15: #{tpu_custom_call.1} parent=1 // pred_check_branch
      %25 = sbr.rel (0) target = $region17
    $region16: #{tpu_custom_call.1} parent=1 // pred_region
      %26 = dma.done [#allocation4], 512
    $region17: #{tpu_custom_call.1} parent=1 // pred_fallthru
      _
    %p27 = scmp.eq.s32.totalorder 0, 0
    // Predicated region
    $region18: #{tpu_custom_call.1} parent=1 // pred_check
      %p28 = pneg %p27
    $region19: #{tpu_custom_call.1} parent=1 // pred_check_branch
      %30 = sbr.rel (%p28) target = $region21
    $region20: #{tpu_custom_call.1} parent=1 // pred_region
      %31 = vst [vmem:[#allocation2] sm:$0xff] 0.0
      %32 = vst [vmem:[#allocation2 + $0x8] sm:$0xff] 0.0
      %33 = vst [vmem:[#allocation2 + $0x10] sm:$0xff] 0.0
      %34 = vst [vmem:[#allocation2 + $0x18] sm:$0xff] 0.0
      %35 = vst [vmem:[#allocation2 + $0x20] sm:$0xff] 0.0
      %36 = vst [vmem:[#allocation2 + $0x28] sm:$0xff] 0.0
      %37 = vst [vmem:[#allocation2 + $0x30] sm:$0xff] 0.0
      %38 = vst [vmem:[#allocation2 + $0x38] sm:$0xff] 0.0
    $region21: #{tpu_custom_call.1} parent=1 // pred_fallthru
      _
    %v39 = vld [vmem:[#allocation2] sm:$0xff]
    %v40 = vld [vmem:[#allocation2 + $0x8] sm:$0xff]
    %v41 = vld [vmem:[#allocation2 + $0x10] sm:$0xff]
    %v42 = vld [vmem:[#allocation2 + $0x18] sm:$0xff]
    %v43 = vld [vmem:[#allocation2 + $0x20] sm:$0xff]
    %v44 = vld [vmem:[#allocation2 + $0x28] sm:$0xff]
    %v45 = vld [vmem:[#allocation2 + $0x30] sm:$0xff]
    %v46 = vld [vmem:[#allocation2 + $0x38] sm:$0xff]
    %v47 = vld [vmem:[%s0] sm:$0xff]
    %v48 = vld [vmem:[%s0 + $0x8] sm:$0xff]
    %v49 = vld [vmem:[#allocation3] sm:$0xff]
    %v50 = vld [vmem:[#allocation3 + $0x8] sm:$0xff]
    %v51 = vld [vmem:[#allocation3 + $0x10] sm:$0xff]
    %v52 = vld [vmem:[#allocation3 + $0x18] sm:$0xff]
    %vm53 = vcmask 64512
    %v55 = vsel %vm53, %v47, 0
    %v58 = vsel %vm53, %v48, 0
    %60 = vmatprep.subr.mxu0 0.0
    %61 = vmatpush1.msra.mxu0 0.0
    %62 = vmatprep.subr.mxu0 0.0
    %63 = vmatpush1.msra.mxu0 0.0
    %64 = vmatprep.subr.mxu0 0.0
    %65 = vmatpush1.msra.mxu0 0.0
    %66 = vmatprep.subr.mxu0 0.0
    %67 = vmatpush1.msra.mxu0 0.0
    %68 = vmatprep.subr.mxu0 0.0
    %69 = vmatpush1.msra.mxu0 0.0
    %70 = vmatprep.subr.mxu0 0.0
    %71 = vmatpush1.msra.mxu0 0.0
    %72 = vmatprep.subr.mxu0 0.0
    %73 = vmatpush1.msra.mxu0 0.0
    %74 = vmatprep.subr.mxu0 0.0
    %75 = vmatpush1.msra.mxu0 0.0
    %76 = vmatprep.subr.mxu0 0.0
    %77 = vmatpush1.msra.mxu0 0.0
    %78 = vmatprep.subr.mxu0 0.0
    %79 = vmatpush1.msra.mxu0 0.0
    %80 = vmatprep.subr.mxu0 0.0
    %81 = vmatpush1.msra.mxu0 0.0
    %82 = vmatprep.subr.mxu0 0.0
    %83 = vmatpush1.msra.mxu0 0.0
    %84 = vmatprep.subr.mxu0 0.0
    %85 = vmatpush1.msra.mxu0 0.0
    %86 = vmatprep.subr.mxu0 0.0
    %87 = vmatpush1.msra.mxu0 0.0
    %88 = vmatprep.subr.mxu0 0.0
    %89 = vmatpush1.msra.mxu0 0.0
    %90 = vmatprep.subr.mxu0 %v50
    %91 = vmatpush1.msra.mxu0 %v49
    %92 = vmatprep.subr.mxu0 0.0
    %93 = vmatpush2.msra.mxu0 0.0
    %94 = vmatprep.subr.mxu0 0.0
    %95 = vmatpush2.msra.mxu0 0.0
    %96 = vmatprep.subr.mxu0 0.0
    %97 = vmatpush2.msra.mxu0 0.0
    %98 = vmatprep.subr.mxu0 0.0
    %99 = vmatpush2.msra.mxu0 0.0
    %100 = vmatprep.subr.mxu0 0.0
    %101 = vmatpush2.msra.mxu0 0.0
    %102 = vmatprep.subr.mxu0 0.0
    %103 = vmatpush2.msra.mxu0 0.0
    %104 = vmatprep.subr.mxu0 0.0
    %105 = vmatpush2.msra.mxu0 0.0
    %106 = vmatprep.subr.mxu0 0.0
    %107 = vmatpush2.msra.mxu0 0.0
    %108 = vmatprep.subr.mxu0 0.0
    %109 = vmatpush2.msra.mxu0 0.0
    %110 = vmatprep.subr.mxu0 0.0
    %111 = vmatpush2.msra.mxu0 0.0
    %112 = vmatprep.subr.mxu0 0.0
    %113 = vmatpush2.msra.mxu0 0.0
    %114 = vmatprep.subr.mxu0 0.0
    %115 = vmatpush2.msra.mxu0 0.0
    %116 = vmatprep.subr.mxu0 0.0
    %117 = vmatpush2.msra.mxu0 0.0
    %118 = vmatprep.subr.mxu0 0.0
    %119 = vmatpush2.msra.mxu0 0.0
    %120 = vmatprep.subr.mxu0 0.0
    %121 = vmatpush2.msra.mxu0 0.0
    %122 = vmatprep.subr.mxu0 0.0
    %123 = vmatpush2.msra.mxu0 0.0
    %124 = vmatprep.mubr.f32.mxu0 0.0
    %125 = vmatmul.mubr.f32.gmra.mxu0 %v55
    %v126 = vpop.f32.mrf.mxu0
    %v127 = vadd.f32 0.0, %v126
    %v128 = vpop.f32.mrf.mxu0
    %v129 = vadd.f32 0.0, %v128
    %130 = vmatprep.mubr.f32.mxu0 0.0
    %131 = vmatmul.mubr.f32.gmra.mxu0 %v58
    %v132 = vpop.f32.mrf.mxu0
    %v133 = vadd.f32 0.0, %v132
    %v134 = vpop.f32.mrf.mxu0
    %v135 = vadd.f32 0.0, %v134
    %136 = vdwg.mxu0
    %137 = vmatprep.subr.mxu0 0.0
    %138 = vmatpush1.msra.mxu0 0.0
    %139 = vmatprep.subr.mxu0 0.0
    %140 = vmatpush1.msra.mxu0 0.0
    %141 = vmatprep.subr.mxu0 0.0
    %142 = vmatpush1.msra.mxu0 0.0
    %143 = vmatprep.subr.mxu0 0.0
    %144 = vmatpush1.msra.mxu0 0.0
    %145 = vmatprep.subr.mxu0 0.0
    %146 = vmatpush1.msra.mxu0 0.0
    %147 = vmatprep.subr.mxu0 0.0
    %148 = vmatpush1.msra.mxu0 0.0
    %149 = vmatprep.subr.mxu0 0.0
    %150 = vmatpush1.msra.mxu0 0.0
    %151 = vmatprep.subr.mxu0 0.0
    %152 = vmatpush1.msra.mxu0 0.0
    %153 = vmatprep.subr.mxu0 0.0
    %154 = vmatpush1.msra.mxu0 0.0
    %155 = vmatprep.subr.mxu0 0.0
    %156 = vmatpush1.msra.mxu0 0.0
    %157 = vmatprep.subr.mxu0 0.0
    %158 = vmatpush1.msra.mxu0 0.0
    %159 = vmatprep.subr.mxu0 0.0
    %160 = vmatpush1.msra.mxu0 0.0
    %161 = vmatprep.subr.mxu0 0.0
    %162 = vmatpush1.msra.mxu0 0.0
    %163 = vmatprep.subr.mxu0 0.0
    %164 = vmatpush1.msra.mxu0 0.0
    %165 = vmatprep.subr.mxu0 0.0
    %166 = vmatpush1.msra.mxu0 0.0
    %167 = vmatprep.subr.mxu0 %v52
    %168 = vmatpush1.msra.mxu0 %v51
    %169 = vmatprep.subr.mxu0 0.0
    %170 = vmatpush2.msra.mxu0 0.0
    %171 = vmatprep.subr.mxu0 0.0
    %172 = vmatpush2.msra.mxu0 0.0
    %173 = vmatprep.subr.mxu0 0.0
    %174 = vmatpush2.msra.mxu0 0.0
    %175 = vmatprep.subr.mxu0 0.0
    %176 = vmatpush2.msra.mxu0 0.0
    %177 = vmatprep.subr.mxu0 0.0
    %178 = vmatpush2.msra.mxu0 0.0
    %179 = vmatprep.subr.mxu0 0.0
    %180 = vmatpush2.msra.mxu0 0.0
    %181 = vmatprep.subr.mxu0 0.0
    %182 = vmatpush2.msra.mxu0 0.0
    %183 = vmatprep.subr.mxu0 0.0
    %184 = vmatpush2.msra.mxu0 0.0
    %185 = vmatprep.subr.mxu0 0.0
    %186 = vmatpush2.msra.mxu0 0.0
    %187 = vmatprep.subr.mxu0 0.0
    %188 = vmatpush2.msra.mxu0 0.0
    %189 = vmatprep.subr.mxu0 0.0
    %190 = vmatpush2.msra.mxu0 0.0
    %191 = vmatprep.subr.mxu0 0.0
    %192 = vmatpush2.msra.mxu0 0.0
    %193 = vmatprep.subr.mxu0 0.0
    %194 = vmatpush2.msra.mxu0 0.0
    %195 = vmatprep.subr.mxu0 0.0
    %196 = vmatpush2.msra.mxu0 0.0
    %197 = vmatprep.subr.mxu0 0.0
    %198 = vmatpush2.msra.mxu0 0.0
    %199 = vmatprep.subr.mxu0 0.0
    %200 = vmatpush2.msra.mxu0 0.0
    %201 = vmatprep.mubr.f32.mxu0 0.0
    %202 = vmatmul.mubr.f32.gmra.mxu0 %v55
    %v203 = vpop.f32.mrf.mxu0
    %v204 = vadd.f32 0.0, %v203
    %v205 = vpop.f32.mrf.mxu0
    %v206 = vadd.f32 0.0, %v205
    %207 = vmatprep.mubr.f32.mxu0 0.0
    %208 = vmatmul.mubr.f32.gmra.mxu0 %v58
    %v209 = vpop.f32.mrf.mxu0
    %v210 = vadd.f32 0.0, %v209
    %v211 = vpop.f32.mrf.mxu0
    %v212 = vadd.f32 0.0, %v211
    %213 = vdwg.mxu0
    %v214 = vadd.f32 %v39, %v127
    %v215 = vadd.f32 %v40, %v129
    %v216 = vadd.f32 %v41, %v204
    %v217 = vadd.f32 %v42, %v206
    %v218 = vadd.f32 %v43, %v133
    %v219 = vadd.f32 %v44, %v135
    %v220 = vadd.f32 %v45, %v210
    %v221 = vadd.f32 %v46, %v212
    %222 = vst [vmem:[#allocation2] sm:$0xff] %v214
    %223 = vst [vmem:[#allocation2 + $0x8] sm:$0xff] %v215
    %224 = vst [vmem:[#allocation2 + $0x10] sm:$0xff] %v216
    %225 = vst [vmem:[#allocation2 + $0x18] sm:$0xff] %v217
    %226 = vst [vmem:[#allocation2 + $0x20] sm:$0xff] %v218
    %227 = vst [vmem:[#allocation2 + $0x28] sm:$0xff] %v219
    %228 = vst [vmem:[#allocation2 + $0x30] sm:$0xff] %v220
    %229 = vst [vmem:[#allocation2 + $0x38] sm:$0xff] %v221
    // Predicated region
    $region22: #{tpu_custom_call.1} parent=1 // pred_check
      %p230 = pneg %p27
    $region23: #{tpu_custom_call.1} parent=1 // pred_check_branch
      %232 = sbr.rel (%p230) target = $region25
    $region24: #{tpu_custom_call.1} parent=1 // pred_region
      %v233 = vld [vmem:[#allocation2] sm:$0xff]
      %v234 = vld [vmem:[#allocation2 + $0x8] sm:$0xff]
      %v235 = vld [vmem:[#allocation2 + $0x10] sm:$0xff]
      %v236 = vld [vmem:[#allocation2 + $0x18] sm:$0xff]
      %v237 = vld [vmem:[#allocation2 + $0x20] sm:$0xff]
      %v238 = vld [vmem:[#allocation2 + $0x28] sm:$0xff]
      %v239 = vld [vmem:[#allocation2 + $0x30] sm:$0xff]
      %v240 = vld [vmem:[#allocation2 + $0x38] sm:$0xff]
      %v241 = vld [vmem:[%s2] sm:$0xf]
      %v243 = vlaneseq
      %v244 = vshrl.u32 %v243, 7
      %v245 = vsub.s32 0, %v244
      %v246 = vrot.slane %v241, %v245
      %v247 = vlaneseq
      %v248 = vshrl.u32 %v247, 7
      %v249 = vsub.s32 1, %v248
      %v250 = vrot.slane %v241, %v249
      %v251 = vlaneseq
      %v252 = vshrl.u32 %v251, 7
      %v253 = vsub.s32 2, %v252
      %v254 = vrot.slane %v241, %v253
      %v255 = vlaneseq
      %v256 = vshrl.u32 %v255, 7
      %v257 = vsub.s32 3, %v256
      %v258 = vrot.slane %v241, %v257
      %v263 = vadd.f32 %v233, %v246
      %v264 = vadd.f32 %v234, %v250
      %v265 = vadd.f32 %v235, %v254
      %v266 = vadd.f32 %v236, %v258
      %v267 = vadd.f32 %v237, %v246
      %v268 = vadd.f32 %v238, %v250
      %v269 = vadd.f32 %v239, %v254
      %v270 = vadd.f32 %v240, %v258
      %271 = vst [vmem:[#allocation6] sm:$0xff] %v263
      %272 = vst [vmem:[#allocation6 + $0x8] sm:$0xff] %v264
      %273 = vst [vmem:[#allocation6 + $0x10] sm:$0xff] %v265
      %274 = vst [vmem:[#allocation6 + $0x18] sm:$0xff] %v266
      %275 = vst [vmem:[#allocation6 + $0x20] sm:$0xff] %v267
      %276 = vst [vmem:[#allocation6 + $0x28] sm:$0xff] %v268
      %277 = vst [vmem:[#allocation6 + $0x30] sm:$0xff] %v269
      %278 = vst [vmem:[#allocation6 + $0x38] sm:$0xff] %v270
    $region25: #{tpu_custom_call.1} parent=1 // pred_fallthru
      _
    // Predicated region
    $region26: #{tpu_custom_call.1} parent=1 // pred_check
      _
    $region27: #{tpu_custom_call.1} parent=1 // pred_check_branch
      %280 = sbr.rel (0) target = $region29
    $region28: #{tpu_custom_call.1} parent=1 // pred_region
      %s282 = ssub.s32 1024, 1024
      %283 = vsyncadd [#allocation5], %s282
      %s284 = sshll.u32 [#allocation6], 4
      %s285 = int_to_ptr.vmem [resolvable:$true] %s284
      %290 = dma.vmem_to_hbm [thread:$0]  %s285, 1024, %s3, [#allocation5], 512, 512, 32
    $region29: #{tpu_custom_call.1} parent=1 // pred_fallthru
      _
    // Predicated region
    $region30: #{tpu_custom_call.1} parent=1 // pred_check
      _
    $region31: #{tpu_custom_call.1} parent=1 // pred_check_branch
      %292 = sbr.rel (0) target = $region33
    $region32: #{tpu_custom_call.1} parent=1 // pred_region
      %293 = dma.done [#allocation5], 1024
    $region33: #{tpu_custom_call.1} parent=1 // pred_fallthru
      _
    %294 = vsyncpa [#allocation4], 1
    %295 = vsyncpa [#allocation5], 1

</llo_original>
